<compile_context>
chip_gen: v7x
topology: tpu7x:2x2x1
jax: 0.10.0
libtpu: 0.0.40
codegen_flags: <defaults>
</compile_context>

<pallas_src>
import functools

import jax
import jax.numpy as jnp
from jax.experimental import pallas as pl
from jax.experimental.pallas import tpu as pltpu

LANE = 128  # TPU vreg lane width; pad feature/class dims to multiples of this.


def _round_up(x: int, m: int) -> int:
    return (x + m - 1) // m * m


def _choose_tm(batch: int) -> int:
    """Batch-tile size: minimize padding waste, prefer >= 2 grid steps (v7x)."""
    if batch < 64:
        return max(8, _round_up(batch, 8))
    best_tm, best_key = None, None
    for tm in (512, 256, 128, 64):
        if tm > batch:          # avoid >= 2x padded rows
            continue
        b_pad = _round_up(batch, tm)
        steps = b_pad // tm
        waste = b_pad - batch
        key = (waste, 0 if steps >= 2 else 1, -tm)
        if best_key is None or key < best_key:
            best_key, best_tm = key, tm
    return best_tm


def _const_block_spec(shape):
    """BlockSpec for a grid-invariant (resident) operand; single-buffered if possible."""
    if hasattr(pl, "Buffered"):
        try:
            return pl.BlockSpec(shape, lambda i: (0, 0), pipeline_mode=pl.Buffered(1))
        except TypeError:
            pass
    return pl.BlockSpec(shape, lambda i: (0, 0))


def _make_fused_mlp_kernel(n_layers: int, num_classes: int):
    """Fused kernel: (Linear->ReLU)^(n_layers-1) -> Linear -> log_softmax."""

    def kernel(x_ref, *args):
        # args = (w0, b0, w1, b1, ..., wL, bL, o_ref)
        o_ref = args[-1]
        wb = args[:-1]

        h = x_ref[...]  # (tm, D0_pad) bf16
        for i in range(n_layers):
            w_ref = wb[2 * i]       # (Din_pad, Dout_pad), bf16
            b_ref = wb[2 * i + 1]   # (1, Dout_pad), f32
            # MXU matmul: bf16 operands, f32 accumulation; f32 epilogue.
            y = jnp.dot(h, w_ref[...], preferred_element_type=jnp.float32)
            y = y + b_ref[...]
            if i < n_layers - 1:
                # TODO(synk): nn.Dropout is identity at inference / dropout=0;
                # a training path would need pltpu.prng_seed + prng_random_bits.
                h = jnp.maximum(y, 0.0).astype(jnp.bfloat16)
            else:
                # Mask padded class columns so they do not affect log_softmax.
                col = jax.lax.broadcasted_iota(jnp.int32, y.shape, 1)
                logits = jnp.where(col < num_classes, y, jnp.float32(-1e30))
                m = jnp.max(logits, axis=-1, keepdims=True)
                shifted = logits - m
                lse = jnp.log(jnp.sum(jnp.exp(shifted), axis=-1, keepdims=True))
                o_ref[...] = (shifted - lse).astype(o_ref.dtype)

    return kernel


def init_mlp_params(key, num_neurons, num_classes):
    """Deterministic init matching nn.Linear fan-in bounds.

    Returns a flat tuple (w0, b0, ..., wL, bL): weights pre-transposed to
    (in, out), zero-padded to lane-dense (multiple-of-128) shapes, weights in
    bf16 (biases stay f32 for the f32 epilogue)."""
    dims = list(num_neurons) + [num_classes]
    params_flat = []
    for i in range(len(dims) - 1):
        key, kw, kb = jax.random.split(key, 3)
        fan_in, fan_out = dims[i], dims[i + 1]
        bound = 1.0 / float(fan_in) ** 0.5
        w = jax.random.uniform(kw, (fan_in, fan_out), jnp.float32, -bound, bound)
        b = jax.random.uniform(kb, (fan_out,), jnp.float32, -bound, bound)

        in_pad, out_pad = _round_up(fan_in, LANE), _round_up(fan_out, LANE)
        w_pad = jnp.zeros((in_pad, out_pad), jnp.float32).at[:fan_in, :fan_out].set(w)
        b_pad = jnp.zeros((1, out_pad), jnp.float32).at[0, :fan_out].set(b)
        params_flat.extend([w_pad.astype(jnp.bfloat16), b_pad])
    return tuple(params_flat)


@functools.partial(jax.jit, static_argnames=("num_classes",))
def mlp_forward(x, params_flat, *, num_classes):
    """Fused MLP forward. x: (batch, in_features) f32. Returns (batch, num_classes) f32."""
    batch, d_in = x.shape
    n_layers = len(params_flat) // 2

    d_in_pad = params_flat[0].shape[0]
    c_pad = params_flat[-1].shape[1]

    tm = _choose_tm(batch)
    b_pad = _round_up(batch, tm)

    # Fold padding + bf16 cast into one op (half the side traffic of a f32 copy).
    x_pad = (jnp.zeros((b_pad, d_in_pad), jnp.bfloat16)
             .at[:batch, :d_in].set(x.astype(jnp.bfloat16)))

    kernel = _make_fused_mlp_kernel(n_layers, num_classes)

    # BlockSpecs: tile batch only; weights/biases are VMEM-resident (single-buffered).
    in_specs = [pl.BlockSpec((tm, d_in_pad), lambda i: (i, 0))]
    for j in range(n_layers):
        w, b = params_flat[2 * j], params_flat[2 * j + 1]
        in_specs.append(_const_block_spec(w.shape))
        in_specs.append(_const_block_spec(b.shape))
    out_spec = pl.BlockSpec((tm, c_pad), lambda i: (i, 0))

    # Cost estimate + explicit VMEM budget.
    flops = 0
    weight_bytes = 0
    max_width = max(d_in_pad, c_pad)
    for j in range(n_layers):
        w, b = params_flat[2 * j], params_flat[2 * j + 1]
        flops += 2 * b_pad * w.shape[0] * w.shape[1]
        weight_bytes += w.size * w.dtype.itemsize + b.size * b.dtype.itemsize
        max_width = max(max_width, w.shape[1])
    bytes_accessed = (x_pad.size * x_pad.dtype.itemsize
                      + b_pad * c_pad * 4 + weight_bytes)
    cost = pl.CostEstimate(flops=flops,
                           transcendentals=b_pad * c_pad,
                           bytes_accessed=bytes_accessed)

    # VMEM: resident weights (x2 in case single-buffering is unavailable)
    # + double-buffered input/output tiles + activation headroom.
    io_bytes = 2 * (tm * d_in_pad * 2) + 2 * (tm * c_pad * 4)
    act_bytes = 4 * tm * max_width * 4
    vmem_limit = 2 * weight_bytes + io_bytes + act_bytes + (8 << 20)
    vmem_limit = min(max(vmem_limit, 32 << 20), 128 << 20)

    out_pad = pl.pallas_call(
        kernel,
        out_shape=jax.ShapeDtypeStruct((b_pad, c_pad), jnp.float32),
        grid=(b_pad // tm,),
        in_specs=in_specs,
        out_specs=out_spec,
        compiler_params=pltpu.CompilerParams(
            dimension_semantics=("parallel",),
            vmem_limit_bytes=vmem_limit),
        cost_estimate=cost,
    )(x_pad, *params_flat)

    return out_pad[:batch, :num_classes]


def _reference(x, params_flat, num_classes):
    """Pure-JAX reference that mirrors the kernel math on the padded bf16 params."""
    n_layers = len(params_flat) // 2
    d_in = x.shape[1]
    d_in_pad = params_flat[0].shape[0]
    h = (jnp.zeros((x.shape[0], d_in_pad), jnp.bfloat16)
         .at[:, :d_in].set(x.astype(jnp.bfloat16)))
    for i in range(n_layers):
        w = params_flat[2 * i]                      # bf16, padded
        b = params_flat[2 * i + 1]                  # f32, padded
        y = jnp.dot(h, w, preferred_element_type=jnp.float32) + b
        h = jnp.maximum(y, 0.0).astype(jnp.bfloat16) if i < n_layers - 1 else y
    logits = h[:, :num_classes]
    return jax.nn.log_softmax(logits, axis=-1)


if __name__ == "__main__":
    key = jax.random.PRNGKey(0)
    num_neurons = [32, 64, 32]   # layer widths
    num_classes = 16
    batch = 8

    kx, kp = jax.random.split(key)
    x = jax.random.normal(kx, (batch, num_neurons[0]), jnp.float32)
    params_flat = init_mlp_params(kp, num_neurons, num_classes)

    out = mlp_forward(x, params_flat, num_classes=num_classes)
    out = jax.block_until_ready(out)

    # Sanity checks: shape, normalized log-probs, and agreement with reference.
    assert out.shape == (batch, num_classes)
    probs_sum = jnp.sum(jnp.exp(out), axis=-1)
    assert jnp.allclose(probs_sum, 1.0, atol=1e-4)
    ref = _reference(x, params_flat, num_classes)
    assert jnp.allclose(out, ref, atol=2e-3, rtol=2e-3)

    print("KERNEL_OK")
</pallas_src>

<mosaic_0001>
module attributes {stable_mosaic.version = 11 : i64} {
  func.func @kernel(%arg0: i32, %arg1: memref<8x128xbf16, #tpu.memory_space<vmem>>, %arg2: memref<128x128xbf16, #tpu.memory_space<vmem>>, %arg3: memref<1x128xf32, #tpu.memory_space<vmem>>, %arg4: memref<128x128xbf16, #tpu.memory_space<vmem>>, %arg5: memref<1x128xf32, #tpu.memory_space<vmem>>, %arg6: memref<128x128xbf16, #tpu.memory_space<vmem>>, %arg7: memref<1x128xf32, #tpu.memory_space<vmem>>, %arg8: memref<8x128xf32, #tpu.memory_space<vmem>>) attributes {dimension_semantics = [#tpu.dimension_semantics<parallel>], iteration_bounds = array<i64: 1>, scalar_prefetch = 0 : i64, scratch_operands = 0 : i64, tpu.core_type = #tpu.core_type<tc>, window_params = [{transform_indices = @transform_0, window_bounds = array<i64: 8, 128>}, {pipeline_mode = #tpu.pipeline_mode<synchronous>, transform_indices = @transform_1, window_bounds = array<i64: 128, 128>}, {pipeline_mode = #tpu.pipeline_mode<synchronous>, transform_indices = @transform_2, window_bounds = array<i64: 1, 128>}, {pipeline_mode = #tpu.pipeline_mode<synchronous>, transform_indices = @transform_3, window_bounds = array<i64: 128, 128>}, {pipeline_mode = #tpu.pipeline_mode<synchronous>, transform_indices = @transform_4, window_bounds = array<i64: 1, 128>}, {pipeline_mode = #tpu.pipeline_mode<synchronous>, transform_indices = @transform_5, window_bounds = array<i64: 128, 128>}, {pipeline_mode = #tpu.pipeline_mode<synchronous>, transform_indices = @transform_6, window_bounds = array<i64: 1, 128>}, {transform_indices = @transform_7, window_bounds = array<i64: 8, 128>}]} {
    %c0 = arith.constant 0 : index
    %c0_0 = arith.constant 0 : index
    %0 = vector.load %arg1[%c0, %c0_0] : memref<8x128xbf16, #tpu.memory_space<vmem>>, vector<8x128xbf16>
    %c0_1 = arith.constant 0 : index
    %c0_2 = arith.constant 0 : index
    %1 = vector.load %arg2[%c0_1, %c0_2] : memref<128x128xbf16, #tpu.memory_space<vmem>>, vector<128x128xbf16>
    %cst = arith.constant dense<0.000000e+00> : vector<8x128xf32>
    %2 = tpu.matmul %0, %1, %cst {dimension_numbers = #tpu.dot_dimension_numbers<[1], [0], [0], [1], [0, 0, 1, 1], [], []>} : vector<8x128xbf16>, vector<128x128xbf16>, vector<8x128xf32> -> vector<8x128xf32>
    %c0_3 = arith.constant 0 : index
    %c0_4 = arith.constant 0 : index
    %3 = vector.load %arg3[%c0_3, %c0_4] : memref<1x128xf32, #tpu.memory_space<vmem>>, vector<1x128xf32>
    %4 = vector.broadcast %3 : vector<1x128xf32> to vector<8x128xf32>
    %5 = arith.addf %2, %4 : vector<8x128xf32>
    %cst_5 = arith.constant 0.000000e+00 : f32
    %6 = vector.broadcast %cst_5 : f32 to vector<8x128xf32>
    %7 = arith.maximumf %5, %6 : vector<8x128xf32>
    %8 = arith.truncf %7 : vector<8x128xf32> to vector<8x128xbf16>
    %c0_6 = arith.constant 0 : index
    %c0_7 = arith.constant 0 : index
    %9 = vector.load %arg4[%c0_6, %c0_7] : memref<128x128xbf16, #tpu.memory_space<vmem>>, vector<128x128xbf16>
    %cst_8 = arith.constant dense<0.000000e+00> : vector<8x128xf32>
    %10 = tpu.matmul %8, %9, %cst_8 {dimension_numbers = #tpu.dot_dimension_numbers<[1], [0], [0], [1], [0, 0, 1, 1], [], []>} : vector<8x128xbf16>, vector<128x128xbf16>, vector<8x128xf32> -> vector<8x128xf32>
    %c0_9 = arith.constant 0 : index
    %c0_10 = arith.constant 0 : index
    %11 = vector.load %arg5[%c0_9, %c0_10] : memref<1x128xf32, #tpu.memory_space<vmem>>, vector<1x128xf32>
    %12 = vector.broadcast %11 : vector<1x128xf32> to vector<8x128xf32>
    %13 = arith.addf %10, %12 : vector<8x128xf32>
    %cst_11 = arith.constant 0.000000e+00 : f32
    %14 = vector.broadcast %cst_11 : f32 to vector<8x128xf32>
    %15 = arith.maximumf %13, %14 : vector<8x128xf32>
    %16 = arith.truncf %15 : vector<8x128xf32> to vector<8x128xbf16>
    %c0_12 = arith.constant 0 : index
    %c0_13 = arith.constant 0 : index
    %17 = vector.load %arg6[%c0_12, %c0_13] : memref<128x128xbf16, #tpu.memory_space<vmem>>, vector<128x128xbf16>
    %cst_14 = arith.constant dense<0.000000e+00> : vector<8x128xf32>
    %18 = tpu.matmul %16, %17, %cst_14 {dimension_numbers = #tpu.dot_dimension_numbers<[1], [0], [0], [1], [0, 0, 1, 1], [], []>} : vector<8x128xbf16>, vector<128x128xbf16>, vector<8x128xf32> -> vector<8x128xf32>
    %c0_15 = arith.constant 0 : index
    %c0_16 = arith.constant 0 : index
    %19 = vector.load %arg7[%c0_15, %c0_16] : memref<1x128xf32, #tpu.memory_space<vmem>>, vector<1x128xf32>
    %20 = vector.broadcast %19 : vector<1x128xf32> to vector<8x128xf32>
    %21 = arith.addf %18, %20 : vector<8x128xf32>
    %22 = tpu.iota {dimensions = array<i32: 1>} : vector<8x128xi32>
    %c16_i32 = arith.constant 16 : i32
    %23 = vector.broadcast %c16_i32 : i32 to vector<8x128xi32>
    %24 = arith.cmpi slt, %22, %23 : vector<8x128xi32>
    %cst_17 = arith.constant -1.000000e+30 : f32
    %25 = vector.broadcast %cst_17 : f32 to vector<8x128xf32>
    %26 = arith.select %24, %21, %25 : vector<8x128xi1>, vector<8x128xf32>
    %cst_18 = arith.constant dense<0xFF800000> : vector<8xf32>
    %27 = vector.multi_reduction <maximumf>, %26, %cst_18 [1] : vector<8x128xf32> to vector<8xf32>
    %28 = vector.shape_cast %27 : vector<8xf32> to vector<8x1xf32>
    %29 = vector.broadcast %28 : vector<8x1xf32> to vector<8x128xf32>
    %30 = arith.subf %26, %29 : vector<8x128xf32>
    %31 = math.exp %30 : vector<8x128xf32>
    %cst_19 = arith.constant dense<0.000000e+00> : vector<8xf32>
    %32 = vector.multi_reduction <add>, %31, %cst_19 [1] : vector<8x128xf32> to vector<8xf32>
    %33 = vector.shape_cast %32 : vector<8xf32> to vector<8x1xf32>
    %34 = math.log %33 : vector<8x1xf32>
    %35 = vector.broadcast %34 : vector<8x1xf32> to vector<8x128xf32>
    %36 = arith.subf %30, %35 : vector<8x128xf32>
    %c0_20 = arith.constant 0 : index
    %c0_21 = arith.constant 0 : index
    %37 = vector.load %arg8[%c0_20, %c0_21] : memref<8x128xf32, #tpu.memory_space<vmem>>, vector<8x128xf32>
    tpu.vector_store %arg8[%c0_20, %c0_21], %36 {strides = array<i32>} : memref<8x128xf32, #tpu.memory_space<vmem>>, vector<8x128xf32>,
    return
  }
  func.func @transform_0(%arg0: i32) -> (i32, i32) {
    %c0_i32 = arith.constant 0 : i32
    %c0_i32_0 = arith.constant 0 : i32
    return %arg0, %c0_i32 : i32, i32
  }
  func.func @transform_1(%arg0: i32) -> (i32, i32) {
    %c0_i32 = arith.constant 0 : i32
    %c0_i32_0 = arith.constant 0 : i32
    %c0_i32_1 = arith.constant 0 : i32
    return %c0_i32, %c0_i32_0 : i32, i32
  }
  func.func @transform_2(%arg0: i32) -> (i32, i32) {
    %c0_i32 = arith.constant 0 : i32
    %c0_i32_0 = arith.constant 0 : i32
    %c0_i32_1 = arith.constant 0 : i32
    return %c0_i32, %c0_i32_0 : i32, i32
  }
  func.func @transform_3(%arg0: i32) -> (i32, i32) {
    %c0_i32 = arith.constant 0 : i32
    %c0_i32_0 = arith.constant 0 : i32
    %c0_i32_1 = arith.constant 0 : i32
    return %c0_i32, %c0_i32_0 : i32, i32
  }
  func.func @transform_4(%arg0: i32) -> (i32, i32) {
    %c0_i32 = arith.constant 0 : i32
    %c0_i32_0 = arith.constant 0 : i32
    %c0_i32_1 = arith.constant 0 : i32
    return %c0_i32, %c0_i32_0 : i32, i32
  }
  func.func @transform_5(%arg0: i32) -> (i32, i32) {
    %c0_i32 = arith.constant 0 : i32
    %c0_i32_0 = arith.constant 0 : i32
    %c0_i32_1 = arith.constant 0 : i32
    return %c0_i32, %c0_i32_0 : i32, i32
  }
  func.func @transform_6(%arg0: i32) -> (i32, i32) {
    %c0_i32 = arith.constant 0 : i32
    %c0_i32_0 = arith.constant 0 : i32
    %c0_i32_1 = arith.constant 0 : i32
    return %c0_i32, %c0_i32_0 : i32, i32
  }
  func.func @transform_7(%arg0: i32) -> (i32, i32) {
    %c0_i32 = arith.constant 0 : i32
    %c0_i32_0 = arith.constant 0 : i32
    return %arg0, %c0_i32 : i32, i32
  }
}

</mosaic_0001>

<llo_original>
// kernel: mlp_forward.1
$region0: #{mlp_forward.1}
  #allocation0 [shape = 'u32[]', space=smem, size = 0x4, offset = 0x4, fixed_abs, tag = 'smem constant byte address 0x4 - core index']
  #allocation1 [shape = 'u32[144,128]{1,0:T(1,128)}', space=vmem, size = 0x12000, scoped, tag = 'internal scratch']
  %s0 = inlined_call_operand.vmem [shape: bf16[8,128], index: 0, kind: input, shape index: {}]
  %s1 = inlined_call_operand.hbm [shape: bf16[128,128], index: 1, kind: input, shape index: {}]
  %s2 = inlined_call_operand.vmem [shape: f32[1,128], index: 2, kind: input, shape index: {}]
  %s3 = inlined_call_operand.hbm [shape: bf16[128,128], index: 3, kind: input, shape index: {}]
  %s4 = inlined_call_operand.vmem [shape: f32[1,128], index: 4, kind: input, shape index: {}]
  %s5 = inlined_call_operand.hbm [shape: bf16[128,128], index: 5, kind: input, shape index: {}]
  %s6 = inlined_call_operand.vmem [shape: f32[1,128], index: 6, kind: input, shape index: {}]
  %s7 = inlined_call_operand.hbm [shape: f32[8,128], index: 7, kind: output, shape index: {}]
  %s8 = sld [smem:[#allocation0]]
  $region50: #{mlp_forward.1} parent=0
    _
  %s10 = ssub.s32 1, %s8
  %s11 = scalar_select 0, %s10, %s8
  $region1: #{mlp_forward.1} parent=0
    #allocation2 [shape = 'u8[32768]{0}', space=vmem, size = 0x8000, scoped, tag = 'input window, operand 1, single buffered']
    #allocation3 [shape = 's32[1]{0}', space=sflag, size = 0x4, scoped, tag = 'scoped memory for mlp_forward.1']
    #allocation4 [shape = 's32[1]{0}', space=sflag, size = 0x4, scoped, tag = 'scoped memory for mlp_forward.1']
    #allocation5 [shape = 'u8[32768]{0}', space=vmem, size = 0x8000, scoped, tag = 'input window, operand 3, single buffered']
    #allocation6 [shape = 's32[1]{0}', space=sflag, size = 0x4, scoped, tag = 'scoped memory for mlp_forward.1']
    #allocation7 [shape = 'u8[32768]{0}', space=vmem, size = 0x8000, scoped, tag = 'input window, operand 5, single buffered']
    #allocation8 [shape = 'u8[4096]{0}', space=vmem, size = 0x1000, scoped, tag = 'output window, operand 0, single buffered']
    %12 = vsyncpa [#allocation3], 0
    %13 = vsyncpa [#allocation6], 0
    %14 = vsyncpa [#allocation4], 0
    // Predicated region
    $region2: #{mlp_forward.1} parent=1 // pred_check
      _
    $region3: #{mlp_forward.1} parent=1 // pred_check_branch
      %16 = sbr.rel (0) target = $region5
    $region4: #{mlp_forward.1} parent=1 // pred_region
      _
    $region5: #{mlp_forward.1} parent=1 // pred_fallthru
      _
    // Predicated region
    $region6: #{mlp_forward.1} parent=1 // pred_check
      _
    $region7: #{mlp_forward.1} parent=1 // pred_check_branch
      %18 = sbr.rel (0) target = $region9
    $region8: #{mlp_forward.1} parent=1 // pred_region
      %s20 = ssub.s32 1024, 1024
      %21 = vsyncadd [#allocation3], %s20
      %s22 = sshll.u32 [#allocation2], 4
      %s23 = int_to_ptr.vmem [resolvable:$true] %s22
      %28 = dma.hbm_to_vmem [thread:$0]  %s1, 1024, %s23, [#allocation3], 64, 64, 4
    $region9: #{mlp_forward.1} parent=1 // pred_fallthru
      _
    // Predicated region
    $region10: #{mlp_forward.1} parent=1 // pred_check
      _
    $region11: #{mlp_forward.1} parent=1 // pred_check_branch
      %30 = sbr.rel (0) target = $region13
    $region12: #{mlp_forward.1} parent=1 // pred_region
      _
    $region13: #{mlp_forward.1} parent=1 // pred_fallthru
      _
    // Predicated region
    $region14: #{mlp_forward.1} parent=1 // pred_check
      _
    $region15: #{mlp_forward.1} parent=1 // pred_check_branch
      %32 = sbr.rel (0) target = $region17
    $region16: #{mlp_forward.1} parent=1 // pred_region
      %s34 = ssub.s32 1024, 1024
      %35 = vsyncadd [#allocation6], %s34
      %s36 = sshll.u32 [#allocation5], 4
      %s37 = int_to_ptr.vmem [resolvable:$true] %s36
      %42 = dma.hbm_to_vmem [thread:$0]  %s3, 1024, %s37, [#allocation6], 64, 64, 4
    $region17: #{mlp_forward.1} parent=1 // pred_fallthru
      _
    // Predicated region
    $region18: #{mlp_forward.1} parent=1 // pred_check
      _
    $region19: #{mlp_forward.1} parent=1 // pred_check_branch
      %44 = sbr.rel (0) target = $region21
    $region20: #{mlp_forward.1} parent=1 // pred_region
      _
    $region21: #{mlp_forward.1} parent=1 // pred_fallthru
      _
    // Predicated region
    $region22: #{mlp_forward.1} parent=1 // pred_check
      _
    $region23: #{mlp_forward.1} parent=1 // pred_check_branch
      %46 = sbr.rel (0) target = $region25
    $region24: #{mlp_forward.1} parent=1 // pred_region
      %s48 = ssub.s32 1024, 1024
      %49 = vsyncadd [#allocation6], %s48
      %s50 = sshll.u32 [#allocation7], 4
      %s51 = int_to_ptr.vmem [resolvable:$true] %s50
      %56 = dma.hbm_to_vmem [thread:$0]  %s5, 1024, %s51, [#allocation6], 64, 64, 4
    $region25: #{mlp_forward.1} parent=1 // pred_fallthru
      _
    // Predicated region
    $region26: #{mlp_forward.1} parent=1 // pred_check
      _
    $region27: #{mlp_forward.1} parent=1 // pred_check_branch
      %58 = sbr.rel (0) target = $region29
    $region28: #{mlp_forward.1} parent=1 // pred_region
      _
    $region29: #{mlp_forward.1} parent=1 // pred_fallthru
      _
    // Predicated region
    $region30: #{mlp_forward.1} parent=1 // pred_check
      _
    $region31: #{mlp_forward.1} parent=1 // pred_check_branch
      %60 = sbr.rel (0) target = $region33
    $region32: #{mlp_forward.1} parent=1 // pred_region
      %61 = dma.done [#allocation3], 1024
    $region33: #{mlp_forward.1} parent=1 // pred_fallthru
      _
    // Predicated region
    $region34: #{mlp_forward.1} parent=1 // pred_check
      _
    $region35: #{mlp_forward.1} parent=1 // pred_check_branch
      %63 = sbr.rel (0) target = $region37
    $region36: #{mlp_forward.1} parent=1 // pred_region
      %64 = dma.done [#allocation6], 1024
    $region37: #{mlp_forward.1} parent=1 // pred_fallthru
      _
    // Predicated region
    $region38: #{mlp_forward.1} parent=1 // pred_check
      _
    $region39: #{mlp_forward.1} parent=1 // pred_check_branch
      %66 = sbr.rel (0) target = $region41
    $region40: #{mlp_forward.1} parent=1 // pred_region
      %67 = dma.done [#allocation6], 1024
    $region41: #{mlp_forward.1} parent=1 // pred_fallthru
      _
    %v69 = vld [vmem:[%s0] sm:$0xf]
    %v70 = vld [vmem:[#allocation2] sm:$0xf]
    %v71 = vld [vmem:[#allocation2 + $0x4] sm:$0xf]
    %v72 = vld [vmem:[#allocation2 + $0x8] sm:$0xf]
    %v73 = vld [vmem:[#allocation2 + $0xc] sm:$0xf]
    %v74 = vld [vmem:[#allocation2 + $0x10] sm:$0xf]
    %v75 = vld [vmem:[#allocation2 + $0x14] sm:$0xf]
    %v76 = vld [vmem:[#allocation2 + $0x18] sm:$0xf]
    %v77 = vld [vmem:[#allocation2 + $0x1c] sm:$0xf]
    %v78 = vld [vmem:[#allocation2 + $0x20] sm:$0xf]
    %v79 = vld [vmem:[#allocation2 + $0x24] sm:$0xf]
    %v80 = vld [vmem:[#allocation2 + $0x28] sm:$0xf]
    %v81 = vld [vmem:[#allocation2 + $0x2c] sm:$0xf]
    %v82 = vld [vmem:[#allocation2 + $0x30] sm:$0xf]
    %v83 = vld [vmem:[#allocation2 + $0x34] sm:$0xf]
    %v84 = vld [vmem:[#allocation2 + $0x38] sm:$0xf]
    %v85 = vld [vmem:[#allocation2 + $0x3c] sm:$0xf]
    %v86 = vld [vmem:[%s2] sm:$0x1]
    %v88 = vlaneseq
    %v89 = vshrl.u32 %v88, 7
    %v90 = vsub.s32 0, %v89
    %v91 = vrot.slane %v86, %v90
    %v109 = vunpack.c.l.b16 %v70
    %v110 = vunpack.c.l.b16 %v71
    %v111 = vunpack.c.l.b16 %v72
    %v112 = vunpack.c.l.b16 %v73
    %v113 = vunpack.c.l.b16 %v74
    %v114 = vunpack.c.l.b16 %v75
    %v115 = vunpack.c.l.b16 %v76
    %v116 = vunpack.c.l.b16 %v77
    %v117 = vunpack.c.l.b16 %v78
    %v118 = vunpack.c.l.b16 %v79
    %v119 = vunpack.c.l.b16 %v80
    %v120 = vunpack.c.l.b16 %v81
    %v121 = vunpack.c.l.b16 %v82
    %v122 = vunpack.c.l.b16 %v83
    %v123 = vunpack.c.l.b16 %v84
    %v124 = vunpack.c.l.b16 %v85
    %v125 = vpack.c.b16 %v110, %v109
    %v126 = vpack.c.b16 %v112, %v111
    %v127 = vpack.c.b16 %v114, %v113
    %v128 = vpack.c.b16 %v116, %v115
    %v129 = vpack.c.b16 %v118, %v117
    %v130 = vpack.c.b16 %v120, %v119
    %v131 = vpack.c.b16 %v122, %v121
    %v132 = vpack.c.b16 %v124, %v123
    %141 = vmatprep.subr.bf16.mxu0 0
    %142 = vmatpush1.bf16.msra.mxu0 %v125
    %143 = vmatprep.subr.bf16.mxu0 0
    %144 = vmatpush1.bf16.msra.mxu0 %v126
    %145 = vmatprep.subr.bf16.mxu0 0
    %146 = vmatpush1.bf16.msra.mxu0 %v127
    %147 = vmatprep.subr.bf16.mxu0 0
    %148 = vmatpush1.bf16.msra.mxu0 %v128
    %149 = vmatprep.subr.bf16.mxu0 0
    %150 = vmatpush1.bf16.msra.mxu0 %v129
    %151 = vmatprep.subr.bf16.mxu0 0
    %152 = vmatpush1.bf16.msra.mxu0 %v130
    %153 = vmatprep.subr.bf16.mxu0 0
    %154 = vmatpush1.bf16.msra.mxu0 %v131
    %155 = vmatprep.subr.bf16.mxu0 0
    %156 = vmatpush1.bf16.msra.mxu0 %v132
    %157 = vmatprep.subr.bf16.mxu0 0
    %158 = vmatpush1.bf16.msra.mxu0 0
    %159 = vmatprep.subr.bf16.mxu0 0
    %160 = vmatpush1.bf16.msra.mxu0 0
    %161 = vmatprep.subr.bf16.mxu0 0
    %162 = vmatpush1.bf16.msra.mxu0 0
    %163 = vmatprep.subr.bf16.mxu0 0
    %164 = vmatpush1.bf16.msra.mxu0 0
    %165 = vmatprep.subr.bf16.mxu0 0
    %166 = vmatpush1.bf16.msra.mxu0 0
    %167 = vmatprep.subr.bf16.mxu0 0
    %168 = vmatpush1.bf16.msra.mxu0 0
    %169 = vmatprep.subr.bf16.mxu0 0
    %170 = vmatpush1.bf16.msra.mxu0 0
    %171 = vmatprep.subr.bf16.mxu0 0
    %172 = vmatpush1.bf16.msra.mxu0 0
    %173 = vmatprep.mubr.bf16.mxu0 0
    %174 = vmatmul.mubr.bf16.gmra.mrb[0].mxu0 %v69
    %v175 = vpop.f32.mrb[0].mxu0
    %v176 = vadd.f32 %v91, %v175
    %v177 = vpop.f32.mrb[0].mxu0
    %v178 = vpop.f32.mrb[0].mxu0
    %v179 = vpop.f32.mrb[0].mxu0
    %180 = vdwg.mxu0
    %v181 = vmax.f32 %v176, 0.0
    %v182 = vpack.c.bf16 %v181, %v181
    %v183 = vld [vmem:[#allocation5] sm:$0xf]
    %v184 = vld [vmem:[#allocation5 + $0x4] sm:$0xf]
    %v185 = vld [vmem:[#allocation5 + $0x8] sm:$0xf]
    %v186 = vld [vmem:[#allocation5 + $0xc] sm:$0xf]
    %v187 = vld [vmem:[#allocation5 + $0x10] sm:$0xf]
    %v188 = vld [vmem:[#allocation5 + $0x14] sm:$0xf]
    %v189 = vld [vmem:[#allocation5 + $0x18] sm:$0xf]
    %v190 = vld [vmem:[#allocation5 + $0x1c] sm:$0xf]
    %v191 = vld [vmem:[#allocation5 + $0x20] sm:$0xf]
    %v192 = vld [vmem:[#allocation5 + $0x24] sm:$0xf]
    %v193 = vld [vmem:[#allocation5 + $0x28] sm:$0xf]
    %v194 = vld [vmem:[#allocation5 + $0x2c] sm:$0xf]
    %v195 = vld [vmem:[#allocation5 + $0x30] sm:$0xf]
    %v196 = vld [vmem:[#allocation5 + $0x34] sm:$0xf]
    %v197 = vld [vmem:[#allocation5 + $0x38] sm:$0xf]
    %v198 = vld [vmem:[#allocation5 + $0x3c] sm:$0xf]
    %v199 = vld [vmem:[%s4] sm:$0x1]
    %v201 = vlaneseq
    %v202 = vshrl.u32 %v201, 7
    %v203 = vsub.s32 0, %v202
    %v204 = vrot.slane %v199, %v203
    %v222 = vunpack.c.l.b16 %v183
    %v223 = vunpack.c.l.b16 %v184
    %v224 = vunpack.c.l.b16 %v185
    %v225 = vunpack.c.l.b16 %v186
    %v226 = vunpack.c.l.b16 %v187
    %v227 = vunpack.c.l.b16 %v188
    %v228 = vunpack.c.l.b16 %v189
    %v229 = vunpack.c.l.b16 %v190
    %v230 = vunpack.c.l.b16 %v191
    %v231 = vunpack.c.l.b16 %v192
    %v232 = vunpack.c.l.b16 %v193
    %v233 = vunpack.c.l.b16 %v194
    %v234 = vunpack.c.l.b16 %v195
    %v235 = vunpack.c.l.b16 %v196
    %v236 = vunpack.c.l.b16 %v197
    %v237 = vunpack.c.l.b16 %v198
    %v238 = vpack.c.b16 %v223, %v222
    %v239 = vpack.c.b16 %v225, %v224
    %v240 = vpack.c.b16 %v227, %v226
    %v241 = vpack.c.b16 %v229, %v228
    %v242 = vpack.c.b16 %v231, %v230
    %v243 = vpack.c.b16 %v233, %v232
    %v244 = vpack.c.b16 %v235, %v234
    %v245 = vpack.c.b16 %v237, %v236
    %254 = vmatprep.subr.bf16.mxu0 0
    %255 = vmatpush1.bf16.msra.mxu0 %v238
    %256 = vmatprep.subr.bf16.mxu0 0
    %257 = vmatpush1.bf16.msra.mxu0 %v239
    %258 = vmatprep.subr.bf16.mxu0 0
    %259 = vmatpush1.bf16.msra.mxu0 %v240
    %260 = vmatprep.subr.bf16.mxu0 0
    %261 = vmatpush1.bf16.msra.mxu0 %v241
    %262 = vmatprep.subr.bf16.mxu0 0
    %263 = vmatpush1.bf16.msra.mxu0 %v242
    %264 = vmatprep.subr.bf16.mxu0 0
    %265 = vmatpush1.bf16.msra.mxu0 %v243
    %266 = vmatprep.subr.bf16.mxu0 0
    %267 = vmatpush1.bf16.msra.mxu0 %v244
    %268 = vmatprep.subr.bf16.mxu0 0
    %269 = vmatpush1.bf16.msra.mxu0 %v245
    %270 = vmatprep.subr.bf16.mxu0 0
    %271 = vmatpush1.bf16.msra.mxu0 0
    %272 = vmatprep.subr.bf16.mxu0 0
    %273 = vmatpush1.bf16.msra.mxu0 0
    %274 = vmatprep.subr.bf16.mxu0 0
    %275 = vmatpush1.bf16.msra.mxu0 0
    %276 = vmatprep.subr.bf16.mxu0 0
    %277 = vmatpush1.bf16.msra.mxu0 0
    %278 = vmatprep.subr.bf16.mxu0 0
    %279 = vmatpush1.bf16.msra.mxu0 0
    %280 = vmatprep.subr.bf16.mxu0 0
    %281 = vmatpush1.bf16.msra.mxu0 0
    %282 = vmatprep.subr.bf16.mxu0 0
    %283 = vmatpush1.bf16.msra.mxu0 0
    %284 = vmatprep.subr.bf16.mxu0 0
    %285 = vmatpush1.bf16.msra.mxu0 0
    %286 = vmatprep.mubr.bf16.mxu0 0
    %287 = vmatmul.mubr.bf16.gmra.mrb[0].mxu0 %v182
    %v288 = vpop.f32.mrb[0].mxu0
    %v289 = vadd.f32 %v204, %v288
    %v290 = vpop.f32.mrb[0].mxu0
    %v291 = vpop.f32.mrb[0].mxu0
    %v292 = vpop.f32.mrb[0].mxu0
    %293 = vdwg.mxu0
    %v294 = vmax.f32 %v289, 0.0
    %v295 = vpack.c.bf16 %v294, %v294
    %v296 = vld [vmem:[#allocation7] sm:$0xf]
    %v297 = vld [vmem:[#allocation7 + $0x4] sm:$0xf]
    %v298 = vld [vmem:[#allocation7 + $0x8] sm:$0xf]
    %v299 = vld [vmem:[#allocation7 + $0xc] sm:$0xf]
    %v300 = vld [vmem:[#allocation7 + $0x10] sm:$0xf]
    %v301 = vld [vmem:[#allocation7 + $0x14] sm:$0xf]
    %v302 = vld [vmem:[#allocation7 + $0x18] sm:$0xf]
    %v303 = vld [vmem:[#allocation7 + $0x1c] sm:$0xf]
    %v304 = vld [vmem:[#allocation7 + $0x20] sm:$0xf]
    %v305 = vld [vmem:[#allocation7 + $0x24] sm:$0xf]
    %v306 = vld [vmem:[#allocation7 + $0x28] sm:$0xf]
    %v307 = vld [vmem:[#allocation7 + $0x2c] sm:$0xf]
    %v308 = vld [vmem:[#allocation7 + $0x30] sm:$0xf]
    %v309 = vld [vmem:[#allocation7 + $0x34] sm:$0xf]
    %v310 = vld [vmem:[#allocation7 + $0x38] sm:$0xf]
    %v311 = vld [vmem:[#allocation7 + $0x3c] sm:$0xf]
    %v312 = vld [vmem:[%s6] sm:$0x1]
    %v314 = vlaneseq
    %v315 = vshrl.u32 %v314, 7
    %v316 = vsub.s32 0, %v315
    %v317 = vrot.slane %v312, %v316
    %v335 = vunpack.c.l.b16 %v296
    %v336 = vunpack.c.l.b16 %v297
    %v337 = vunpack.c.l.b16 %v298
    %v338 = vunpack.c.l.b16 %v299
    %v339 = vunpack.c.l.b16 %v300
    %v340 = vunpack.c.l.b16 %v301
    %v341 = vunpack.c.l.b16 %v302
    %v342 = vunpack.c.l.b16 %v303
    %v343 = vunpack.c.l.b16 %v304
    %v344 = vunpack.c.l.b16 %v305
    %v345 = vunpack.c.l.b16 %v306
    %v346 = vunpack.c.l.b16 %v307
    %v347 = vunpack.c.l.b16 %v308
    %v348 = vunpack.c.l.b16 %v309
    %v349 = vunpack.c.l.b16 %v310
    %v350 = vunpack.c.l.b16 %v311
    %v351 = vpack.c.b16 %v336, %v335
    %v352 = vpack.c.b16 %v338, %v337
    %v353 = vpack.c.b16 %v340, %v339
    %v354 = vpack.c.b16 %v342, %v341
    %v355 = vpack.c.b16 %v344, %v343
    %v356 = vpack.c.b16 %v346, %v345
    %v357 = vpack.c.b16 %v348, %v347
    %v358 = vpack.c.b16 %v350, %v349
    %367 = vmatprep.subr.bf16.mxu0 0
    %368 = vmatpush1.bf16.msra.mxu0 %v351
    %369 = vmatprep.subr.bf16.mxu0 0
    %370 = vmatpush1.bf16.msra.mxu0 %v352
    %371 = vmatprep.subr.bf16.mxu0 0
    %372 = vmatpush1.bf16.msra.mxu0 %v353
    %373 = vmatprep.subr.bf16.mxu0 0
    %374 = vmatpush1.bf16.msra.mxu0 %v354
    %375 = vmatprep.subr.bf16.mxu0 0
    %376 = vmatpush1.bf16.msra.mxu0 %v355
    %377 = vmatprep.subr.bf16.mxu0 0
    %378 = vmatpush1.bf16.msra.mxu0 %v356
    %379 = vmatprep.subr.bf16.mxu0 0
    %380 = vmatpush1.bf16.msra.mxu0 %v357
    %381 = vmatprep.subr.bf16.mxu0 0
    %382 = vmatpush1.bf16.msra.mxu0 %v358
    %383 = vmatprep.subr.bf16.mxu0 0
    %384 = vmatpush1.bf16.msra.mxu0 0
    %385 = vmatprep.subr.bf16.mxu0 0
    %386 = vmatpush1.bf16.msra.mxu0 0
    %387 = vmatprep.subr.bf16.mxu0 0
    %388 = vmatpush1.bf16.msra.mxu0 0
    %389 = vmatprep.subr.bf16.mxu0 0
    %390 = vmatpush1.bf16.msra.mxu0 0
    %391 = vmatprep.subr.bf16.mxu0 0
    %392 = vmatpush1.bf16.msra.mxu0 0
    %393 = vmatprep.subr.bf16.mxu0 0
    %394 = vmatpush1.bf16.msra.mxu0 0
    %395 = vmatprep.subr.bf16.mxu0 0
    %396 = vmatpush1.bf16.msra.mxu0 0
    %397 = vmatprep.subr.bf16.mxu0 0
    %398 = vmatpush1.bf16.msra.mxu0 0
    %399 = vmatprep.mubr.bf16.mxu0 0
    %400 = vmatmul.mubr.bf16.gmra.mrb[0].mxu0 %v295
    %v401 = vpop.f32.mrb[0].mxu0
    %v402 = vadd.f32 %v317, %v401
    %v403 = vpop.f32.mrb[0].mxu0
    %v404 = vpop.f32.mrb[0].mxu0
    %v405 = vpop.f32.mrb[0].mxu0
    %406 = vdwg.mxu0
    %v407 = vlaneseq
    %v408 = vand.u32 %v407, 127
    %vm409 = vcmp.lt.s32.totalorder %v408, 16
    %v410 = vsel %vm409, %v402, -1e+30
    %411 = vmax.xlane.f32.xlu0 %v410
    %v412 = vpop.xlane.xlu0 %411
    %v413 = vsub.f32 %v410, %v412
    %v414 = vmul.f32 %v413, 1.442695
    %v415 = vpow.pop %v414
    %416 = vadd.xlane.f32.xlu0 %v415
    %v417 = vpop.xlane.xlu0 %416
    %v418 = vlog2.pop %v417
    %v419 = vmul.f32 %v418, 0.6931472
    %v420 = vsub.f32 %v413, %v419
    %421 = vst [vmem:[#allocation8] sm:$0xff] %v420
    // Predicated region
    $region42: #{mlp_forward.1} parent=1 // pred_check
      _
    $region43: #{mlp_forward.1} parent=1 // pred_check_branch
      %423 = sbr.rel (0) target = $region45
    $region44: #{mlp_forward.1} parent=1 // pred_region
      %s425 = ssub.s32 128, 128
      %426 = vsyncadd [#allocation4], %s425
      %s428 = sshll.u32 [#allocation8], 4
      %s429 = int_to_ptr.vmem [resolvable:$true] %s428
      %431 = dma.vmem_to_hbm [thread:$0]  %s429, 128, %s7, [#allocation4]
    $region45: #{mlp_forward.1} parent=1 // pred_fallthru
      _
    // Predicated region
    $region46: #{mlp_forward.1} parent=1 // pred_check
      _
    $region47: #{mlp_forward.1} parent=1 // pred_check_branch
      %433 = sbr.rel (0) target = $region49
    $region48: #{mlp_forward.1} parent=1 // pred_region
      %434 = dma.done [#allocation4], 128
    $region49: #{mlp_forward.1} parent=1 // pred_fallthru
      _
    %435 = vsyncpa [#allocation3], 1
    %436 = vsyncpa [#allocation6], 1
    %437 = vsyncpa [#allocation4], 1

</llo_original>
